<compile_context>
chip_gen: v6e
topology: v6e:2x2x1
jax: 0.10.0
libtpu: 0.0.40
codegen_flags: <defaults>
</compile_context>

<pallas_src>
import functools

import jax
import jax.numpy as jnp
from jax.experimental import pallas as pl
from jax.experimental.pallas import tpu as pltpu


def _vcl_kernel(x_ref, wmu_ref, wstd_ref, epsw_ref, b_ref, o_ref, acc_ref, *,
                compute_dtype):
    """One grid step: partial (M, bn) @ (bn, to) of the reparameterized weights."""
    n_idx = pl.program_id(2)                      # N-reduction axis (last)

    @pl.when(n_idx == 0)
    def _init():
        acc_ref[...] = jnp.zeros_like(acc_ref)

    # Reparameterization in f32 on the VPU; only the MXU operands are downcast.
    w_k = wmu_ref[...] + wstd_ref[...] * epsw_ref[...]           # (bn, to) f32
    acc_ref[...] += jnp.dot(
        x_ref[...].astype(compute_dtype),
        w_k.astype(compute_dtype),
        preferred_element_type=jnp.float32)

    @pl.when(n_idx == pl.num_programs(2) - 1)
    def _finalize():
        o_ref[...] = (acc_ref[...] + b_ref[...]).astype(o_ref.dtype)


def _pick_tile(dim, preferred):
    """Largest lane-friendly tile that divides `dim`, else the full dim."""
    for t in (preferred, 1024, 512, 256, 128):
        if t <= dim and dim % t == 0:
            return t
    return dim


@functools.partial(jax.jit,
                   static_argnames=("block_o", "block_n", "compute_dtype"))
def vcl_forward_with_eps(x, weight_mu, weight_log_var, bias_mu, bias_log_var,
                         eps_w, eps_b, *, block_o=256, block_n=1024,
                         compute_dtype=jnp.bfloat16):
    """VCL forward given pre-drawn eps.  x: (K,M,N) -> (K,M,O)."""
    K, M, N = x.shape
    N2, O = weight_mu.shape
    assert N == N2, (N, N2)

    f32 = jnp.float32
    weight_mu_f = weight_mu.astype(f32)
    # Hoist std = exp(0.5*log_var) out of the per-sample loop (one XLA pass).
    w_std = jnp.exp(0.5 * weight_log_var).astype(f32)
    # Bias sampling is tiny (K*O): do it entirely in the wrapper.
    sampled_b = (bias_mu.astype(f32)[None, :]
                 + jnp.exp(0.5 * bias_log_var).astype(f32)[None, :]
                 * eps_b.astype(f32)).reshape(K, 1, O)
    eps_w = eps_w.astype(f32)

    to = _pick_tile(O, block_o)
    bn = _pick_tile(N, block_n)
    n_o = O // to
    n_n = N // bn

    # Grid order: put the axis whose block re-reads are cheaper outermost.
    #  - K outermost  -> weight tiles re-read (K-1) extra times.
    #  - n_o outermost -> x[k] blocks re-read (n_o-1) extra times.
    weight_reread = (K - 1) * 2 * N * O
    x_reread = (n_o - 1) * K * M * N
    o_major = x_reread <= weight_reread

    if o_major:
        grid = (n_o, K, n_n)
        x_map = lambda j, k, n: (k, 0, n)
        w_map = lambda j, k, n: (n, j)
        epsw_map = lambda j, k, n: (k, n, j)
        b_map = lambda j, k, n: (k, 0, j)
        o_map = lambda j, k, n: (k, 0, j)
    else:
        grid = (K, n_o, n_n)
        x_map = lambda k, j, n: (k, 0, n)
        w_map = lambda k, j, n: (n, j)
        epsw_map = lambda k, j, n: (k, n, j)
        b_map = lambda k, j, n: (k, 0, j)
        o_map = lambda k, j, n: (k, 0, j)

    in_specs = [
        pl.BlockSpec((None, M, bn), x_map),       # x[k] N-slab
        pl.BlockSpec((bn, to), w_map),            # weight_mu tile
        pl.BlockSpec((bn, to), w_map),            # weight_std tile
        pl.BlockSpec((None, bn, to), epsw_map),   # eps_w tile
        pl.BlockSpec((None, 1, to), b_map),       # sampled bias tile
    ]
    out_specs = pl.BlockSpec((None, M, to), o_map)

    # Explicit VMEM accounting: double-buffered inputs/outputs + accumulator
    # + w_k / cast temporaries, so the same config fits v7x's 64 MiB as well
    # as v5e/v6e's 128 MiB.
    xb = x.dtype.itemsize
    vmem_est = (2 * M * bn * xb            # x (double buffered)
                + 2 * 2 * bn * to * 4      # weight_mu + weight_std
                + 2 * bn * to * 4          # eps_w
                + 2 * to * 4               # sampled bias
                + 2 * M * to * xb          # output
                + M * to * 4               # accumulator scratch
                + 3 * bn * to * 4)         # w_k + bf16 cast temporaries
    vmem_limit = int(min(100 * 1024 * 1024,
                         max(32 * 1024 * 1024, int(vmem_est * 1.5))))

    cost = pl.CostEstimate(
        flops=2 * K * M * N * O + 2 * K * N * O,
        transcendentals=0,
        bytes_accessed=4 * (K * M * N + K * N * O + 2 * N * O + K * O
                            + K * M * O))

    kernel = functools.partial(_vcl_kernel, compute_dtype=compute_dtype)

    return pl.pallas_call(
        kernel,
        out_shape=jax.ShapeDtypeStruct((K, M, O), x.dtype),
        grid_spec=pltpu.PrefetchScalarGridSpec(
            num_scalar_prefetch=0,
            grid=grid,
            in_specs=in_specs,
            out_specs=out_specs,
            scratch_shapes=[pltpu.VMEM((M, to), jnp.float32)]),
        compiler_params=pltpu.CompilerParams(
            dimension_semantics=("parallel", "parallel", "arbitrary"),
            vmem_limit_bytes=vmem_limit),
        cost_estimate=cost,
    )(x, weight_mu_f, w_std, eps_w, sampled_b)


def sample_vcl_eps(key, num_samples, in_dim, out_dim):
    """Deterministic eps draws matching torch.empty(...).normal_(0, 1)."""
    kw, kb = jax.random.split(key)
    eps_w = jax.random.normal(kw, (num_samples, in_dim, out_dim), jnp.float32)
    eps_b = jax.random.normal(kb, (num_samples, out_dim), jnp.float32)
    return eps_w, eps_b


def vcl_forward(x, weight_mu, weight_log_var, bias_mu, bias_log_var, key, **kw):
    """Full VCL forward: draw eps for `key`, then run the Pallas kernel."""
    K = x.shape[0]
    N, O = weight_mu.shape
    eps_w, eps_b = sample_vcl_eps(key, K, N, O)
    return vcl_forward_with_eps(x, weight_mu, weight_log_var, bias_mu,
                                bias_log_var, eps_w, eps_b, **kw)


def vcl_forward_ref(x, weight_mu, weight_log_var, bias_mu, bias_log_var,
                    eps_w, eps_b):
    """Pure-JAX reference of the PyTorch forward, given the same eps draws."""
    w_std = jnp.exp(0.5 * weight_log_var)
    b_std = jnp.exp(0.5 * bias_log_var)
    sampled_w = weight_mu[None] + w_std[None] * eps_w                  # (K,N,O)
    sampled_b = bias_mu[None, :] + b_std[None, :] * eps_b              # (K,O)
    return jnp.einsum('kmn,kno->kmo', x, sampled_w) + sampled_b[:, None, :]


if __name__ == "__main__":
    # Small but lane-dense shapes: 2 MC samples, 64 rows, 256 -> 256 features.
    K, M, N, O = 2, 64, 256, 256

    root = jax.random.PRNGKey(0)
    k_x, k_wmu, k_bmu, k_eps = jax.random.split(root, 4)

    # Parameter init mirroring reset_parameters(): mu ~ N(0, 0.1), log_var = -6.
    weight_mu = 0.1 * jax.random.normal(k_wmu, (N, O), dtype=jnp.float32)
    weight_log_var = jnp.full((N, O), -6.0, dtype=jnp.float32)
    bias_mu = 0.1 * jax.random.normal(k_bmu, (O,), dtype=jnp.float32)
    bias_log_var = jnp.full((O,), -6.0, dtype=jnp.float32)
    x = jax.random.normal(k_x, (K, M, N), dtype=jnp.float32)

    # Production path: bf16 MXU operands, f32 accumulation, 256-wide O tiles.
    out = vcl_forward(x, weight_mu, weight_log_var, bias_mu, bias_log_var, k_eps)
    out = jax.block_until_ready(out)
    assert out.shape == (K, M, O)
    assert bool(jnp.all(jnp.isfinite(out)))

    # Correctness vs. a pure-JAX reference using the exact same eps draws.
    eps_w, eps_b = sample_vcl_eps(k_eps, K, N, O)
    ref = vcl_forward_ref(x, weight_mu, weight_log_var, bias_mu, bias_log_var,
                          eps_w, eps_b)
    ref = jax.block_until_ready(ref)

    # bf16 MXU path: loose tolerance (bf16 operands, f32 accumulate).
    assert jnp.allclose(out, ref, atol=5e-2, rtol=5e-2), \
        "bf16 kernel vs reference mismatch"

    # f32 MXU path with explicit N/O tiling (exercises the accumulator /
    # pl.when reduction path): tight tolerance.
    out_f32 = vcl_forward_with_eps(x, weight_mu, weight_log_var, bias_mu,
                                   bias_log_var, eps_w, eps_b,
                                   block_o=128, block_n=128,
                                   compute_dtype=jnp.float32)
    out_f32 = jax.block_until_ready(out_f32)
    assert jnp.allclose(out_f32, ref, atol=1e-4, rtol=1e-4), \
        "f32 kernel vs reference mismatch"

    print("KERNEL_OK")
</pallas_src>

<mosaic_0001>
module attributes {stable_mosaic.version = 11 : i64} {
  func.func @_vcl_kernel(%arg0: i32, %arg1: i32, %arg2: i32, %arg3: memref<1x64x256xf32, #tpu.memory_space<vmem>>, %arg4: memref<256x256xf32, #tpu.memory_space<vmem>>, %arg5: memref<256x256xf32, #tpu.memory_space<vmem>>, %arg6: memref<1x256x256xf32, #tpu.memory_space<vmem>>, %arg7: memref<1x1x256xf32, #tpu.memory_space<vmem>>, %arg8: memref<1x64x256xf32, #tpu.memory_space<vmem>>, %arg9: memref<64x256xf32, #tpu.memory_space<vmem>>) attributes {dimension_semantics = [#tpu.dimension_semantics<parallel>, #tpu.dimension_semantics<parallel>, #tpu.dimension_semantics<arbitrary>], iteration_bounds = array<i64: 1, 2, 1>, scalar_prefetch = 0 : i64, scratch_operands = 1 : i64, tpu.core_type = #tpu.core_type<tc>, window_params = [{transform_indices = @transform_0, window_bounds = array<i64: 1, 64, 256>}, {transform_indices = @transform_1, window_bounds = array<i64: 256, 256>}, {transform_indices = @transform_2, window_bounds = array<i64: 256, 256>}, {transform_indices = @transform_3, window_bounds = array<i64: 1, 256, 256>}, {transform_indices = @transform_4, window_bounds = array<i64: 1, 1, 256>}, {transform_indices = @transform_5, window_bounds = array<i64: 1, 64, 256>}]} {
    %c0_i32 = arith.constant 0 : i32
    %0 = arith.cmpi eq, %arg2, %c0_i32 : i32
    %1 = arith.extui %0 : i1 to i32
    %c0_i32_0 = arith.constant 0 : i32
    %2 = arith.cmpi ne, %1, %c0_i32_0 : i32
    scf.if %2 {
      %cst_16 = arith.constant 0.000000e+00 : f32
      %20 = vector.broadcast %cst_16 : f32 to vector<64x256xf32>
      %c0_17 = arith.constant 0 : index
      %c0_18 = arith.constant 0 : index
      %21 = vector.load %arg9[%c0_17, %c0_18] : memref<64x256xf32, #tpu.memory_space<vmem>>, vector<64x256xf32>
      tpu.vector_store %arg9[%c0_17, %c0_18], %20 {strides = array<i32>} : memref<64x256xf32, #tpu.memory_space<vmem>>, vector<64x256xf32>,
    } else {
    }
    %c0 = arith.constant 0 : index
    %c0_1 = arith.constant 0 : index
    %3 = vector.load %arg4[%c0, %c0_1] : memref<256x256xf32, #tpu.memory_space<vmem>>, vector<256x256xf32>
    %c0_2 = arith.constant 0 : index
    %c0_3 = arith.constant 0 : index
    %4 = vector.load %arg5[%c0_2, %c0_3] : memref<256x256xf32, #tpu.memory_space<vmem>>, vector<256x256xf32>
    %c0_4 = arith.constant 0 : index
    %c0_5 = arith.constant 0 : index
    %c0_6 = arith.constant 0 : index
    %5 = vector.load %arg6[%c0_4, %c0_5, %c0_6] : memref<1x256x256xf32, #tpu.memory_space<vmem>>, vector<1x256x256xf32>
    %6 = vector.shape_cast %5 : vector<1x256x256xf32> to vector<256x256xf32>
    %7 = arith.mulf %4, %6 : vector<256x256xf32>
    %8 = arith.addf %3, %7 : vector<256x256xf32>
    %c0_7 = arith.constant 0 : index
    %c0_8 = arith.constant 0 : index
    %9 = vector.load %arg9[%c0_7, %c0_8] : memref<64x256xf32, #tpu.memory_space<vmem>>, vector<64x256xf32>
    %c0_9 = arith.constant 0 : index
    %c0_10 = arith.constant 0 : index
    %c0_11 = arith.constant 0 : index
    %10 = vector.load %arg3[%c0_9, %c0_10, %c0_11] : memref<1x64x256xf32, #tpu.memory_space<vmem>>, vector<1x64x256xf32>
    %11 = vector.shape_cast %10 : vector<1x64x256xf32> to vector<64x256xf32>
    %12 = arith.truncf %11 : vector<64x256xf32> to vector<64x256xbf16>
    %13 = arith.truncf %8 : vector<256x256xf32> to vector<256x256xbf16>
    %cst = arith.constant dense<0.000000e+00> : vector<64x256xf32>
    %14 = tpu.matmul %12, %13, %cst {dimension_numbers = #tpu.dot_dimension_numbers<[1], [0], [0], [1], [0, 0, 1, 1], [], []>} : vector<64x256xbf16>, vector<256x256xbf16>, vector<64x256xf32> -> vector<64x256xf32>
    %15 = arith.addf %9, %14 : vector<64x256xf32>
    %c0_12 = arith.constant 0 : index
    %c0_13 = arith.constant 0 : index
    %16 = vector.load %arg9[%c0_12, %c0_13] : memref<64x256xf32, #tpu.memory_space<vmem>>, vector<64x256xf32>
    tpu.vector_store %arg9[%c0_12, %c0_13], %15 {strides = array<i32>} : memref<64x256xf32, #tpu.memory_space<vmem>>, vector<64x256xf32>,
    %c0_i32_14 = arith.constant 0 : i32
    %17 = arith.cmpi eq, %arg2, %c0_i32_14 : i32
    %18 = arith.extui %17 : i1 to i32
    %c0_i32_15 = arith.constant 0 : i32
    %19 = arith.cmpi ne, %18, %c0_i32_15 : i32
    scf.if %19 {
      %c0_16 = arith.constant 0 : index
      %c0_17 = arith.constant 0 : index
      %20 = vector.load %arg9[%c0_16, %c0_17] : memref<64x256xf32, #tpu.memory_space<vmem>>, vector<64x256xf32>
      %c0_18 = arith.constant 0 : index
      %c0_19 = arith.constant 0 : index
      %c0_20 = arith.constant 0 : index
      %21 = vector.load %arg7[%c0_18, %c0_19, %c0_20] : memref<1x1x256xf32, #tpu.memory_space<vmem>>, vector<1x1x256xf32>
      %22 = vector.shape_cast %21 : vector<1x1x256xf32> to vector<1x256xf32>
      %23 = vector.broadcast %22 : vector<1x256xf32> to vector<64x256xf32>
      %24 = arith.addf %20, %23 : vector<64x256xf32>
      %c0_21 = arith.constant 0 : index
      %c0_22 = arith.constant 0 : index
      %c0_23 = arith.constant 0 : index
      %25 = vector.load %arg8[%c0_21, %c0_22, %c0_23] : memref<1x64x256xf32, #tpu.memory_space<vmem>>, vector<1x64x256xf32>
      %26 = vector.shape_cast %25 : vector<1x64x256xf32> to vector<64x256xf32>
      %27 = vector.shape_cast %24 : vector<64x256xf32> to vector<1x64x256xf32>
      tpu.vector_store %arg8[%c0_21, %c0_22, %c0_23], %27 {strides = array<i32>} : memref<1x64x256xf32, #tpu.memory_space<vmem>>, vector<1x64x256xf32>,
    } else {
    }
    return
  }
  func.func @transform_0(%arg0: i32, %arg1: i32, %arg2: i32) -> (i32, i32, i32) {
    %c0_i32 = arith.constant 0 : i32
    %c0_i32_0 = arith.constant 0 : i32
    return %arg1, %c0_i32, %arg2 : i32, i32, i32
  }
  func.func @transform_1(%arg0: i32, %arg1: i32, %arg2: i32) -> (i32, i32) {
    %c0_i32 = arith.constant 0 : i32
    return %arg2, %arg0 : i32, i32
  }
  func.func @transform_2(%arg0: i32, %arg1: i32, %arg2: i32) -> (i32, i32) {
    %c0_i32 = arith.constant 0 : i32
    return %arg2, %arg0 : i32, i32
  }
  func.func @transform_3(%arg0: i32, %arg1: i32, %arg2: i32) -> (i32, i32, i32) {
    %c0_i32 = arith.constant 0 : i32
    return %arg1, %arg2, %arg0 : i32, i32, i32
  }
  func.func @transform_4(%arg0: i32, %arg1: i32, %arg2: i32) -> (i32, i32, i32) {
    %c0_i32 = arith.constant 0 : i32
    %c0_i32_0 = arith.constant 0 : i32
    return %arg1, %c0_i32, %arg0 : i32, i32, i32
  }
  func.func @transform_5(%arg0: i32, %arg1: i32, %arg2: i32) -> (i32, i32, i32) {
    %c0_i32 = arith.constant 0 : i32
    %c0_i32_0 = arith.constant 0 : i32
    return %arg1, %c0_i32, %arg0 : i32, i32, i32
  }
}

</mosaic_0001>

<llo_original>
// kernel: vcl_forward_with_eps.1
$region0: #{vcl_forward_with_eps.1}
  #allocation0 [shape = 'u32[]', space=smem, size = 0x4, offset = 0x4, fixed_abs, tag = 'smem constant byte address 0x4 - core index']
  #allocation1 [shape = 'u32[144,128]{1,0:T(1,128)}', space=vmem, size = 0x12000, scoped, tag = 'internal scratch']
  #allocation2 [shape = 'f32[64,256]{1,0:T(8,128)}', space=vmem, size = 0x10000, scoped, tag = 'scratch operand']
  %s0 = inlined_call_operand.hbm [shape: f32[2,64,256], index: 0, kind: input, shape index: {}]
  %s1 = inlined_call_operand.hbm [shape: f32[256,256], index: 1, kind: input, shape index: {}]
  %s2 = inlined_call_operand.vmem [shape: f32[256,256], index: 2, kind: input, shape index: {}]
  %s3 = inlined_call_operand.vmem [shape: f32[2,256,256], index: 3, kind: input, shape index: {}]
  %s4 = inlined_call_operand.vmem [shape: f32[2,1,256], index: 4, kind: input, shape index: {}]
  %s5 = inlined_call_operand.hbm [shape: f32[2,64,256], index: 5, kind: output, shape index: {}]
  %s6 = sld [smem:[#allocation0]]
  $region69: #{vcl_forward_with_eps.1} parent=0
    _
  %s8 = ssub.s32 1, %s6
  %s9 = scalar_select 0, %s8, %s6
  $region1: #{vcl_forward_with_eps.1} parent=0
    #allocation3 [shape = 'u8[131072]{0}', space=vmem, size = 0x20000, scoped, tag = 'input window, operand 0']
    #allocation4 [shape = 's32[2]{0}', space=sflag, size = 0x8, scoped, tag = 'scoped memory for vcl_forward_with_eps.1']
    #allocation5 [shape = 's32[2]{0}', space=sflag, size = 0x8, scoped, tag = 'scoped memory for vcl_forward_with_eps.1']
    #allocation6 [shape = 'u8[262144]{0}', space=vmem, size = 0x40000, scoped, tag = 'input window, operand 1, single buffered']
    #allocation7 [shape = 's32[1]{0}', space=sflag, size = 0x4, scoped, tag = 'scoped memory for vcl_forward_with_eps.1']
    #allocation8 [shape = 'u8[131072]{0}', space=vmem, size = 0x20000, scoped, tag = 'output window, operand 0']
    %10 = vsyncpa [#allocation4], 0
    %s11 = scalar_lea.sflag [#allocation4], 1
    %12 = vsyncpa %s11, 0
    %13 = vsyncpa [#allocation7], 0
    %14 = vsyncpa [#allocation5], 0
    %s15 = scalar_lea.sflag [#allocation5], 1
    %16 = vsyncpa %s15, 0
    loop: start=0, step=1, limit=4
    $region2: #{vcl_forward_with_eps.1} parent=1 // loop_pre_header
      _
    $region3: #{vcl_forward_with_eps.1} parent=1 // loop_header
      %s18 = sphi 0, %s22
      %p19 = scmp.ge.s32.totalorder %s18, 4
      %s25 = sphi 0, %s44
      %s26 = sphi 0, %s40
      %s27 = sphi 0, %s36
      %s28 = sphi 0, %s25
      %s29 = sphi 0, %s26
      %s30 = sphi 0, %s27
      %s31 = sphi 0, %s28
      %s32 = sphi 0, %s29
      %s33 = sphi 0, %s30
      %s49 = sphi 0, %s51
      %s52 = sphi 0, %s49
      %s53 = sphi 0, %s52
      %s69 = sphi 0, %s53
      %s77 = sphi 0, %s79
      %s80 = sphi 0, %s77
      %s81 = sphi 0, %s80
      %s97 = sphi 0, %s81
      %s105 = sphi 0, %s107
      %s108 = sphi 0, %s105
      %s109 = sphi 0, %s108
      %s125 = sphi 0, %s109
      %s135 = sphi 0, %s137
      %s138 = sphi 0, %s135
      %s139 = sphi 0, %s138
      %s155 = sphi 0, %s139
      %s163 = sphi 0, %s165
      %s166 = sphi 0, %s163
      %s167 = sphi 0, %s166
      %s183 = sphi 0, %s167
      %s191 = sphi 0, %s193
      %s194 = sphi 0, %s191
      %s195 = sphi 0, %s194
      %s211 = sphi 0, %s195
    $region4: #{vcl_forward_with_eps.1} parent=1 // loop_header_branch
      %21 = sbr.rel (%p19) target = $region8
    $region5: #{vcl_forward_with_eps.1} parent=1 // loop_body
      %s23 = ssub.s32 %s18, 1
      %s24 = ssub.s32 %s18, 2
      %s34 = sadd.s32 1, %s27
      %p35 = scmp.ge.s32.totalorder %s34, 1
      %s36 = scalar_select %p35, 0, %s34
      %s37 = sadd.s32 1, %s26
      %s38 = scalar_select %p35, %s37, %s26
      %p39 = scmp.ge.s32.totalorder %s38, 2
      %s40 = scalar_select %p39, 0, %s38
      %s41 = sadd.s32 1, %s25
      %s42 = scalar_select %p39, %s41, %s25
      %p43 = scmp.ge.s32.totalorder %s42, 1
      %s44 = scalar_select %p43, 0, %s42
      %s45 = ssub.s32 %s26, %s40
      %s46 = ssub.s32 %s27, %s36
      %s47 = sor.u32 %s45, %s46
      %p48 = scmp.eq.s32.totalorder %s47, 0
      %s50 = sadd.s32 %s49, 1
      %s51 = scalar_select %p48, %s49, %s50
      %p54 = pneg %p48
      %p55 = scmp.eq.s32.totalorder %s18, 1
      %p56 = por %p54, %p55
      %p57 = scmp.ne.s32.totalorder %s49, %s52
      %p58 = scmp.eq.s32.totalorder %s18, 0
      %p59 = por %p57, %p58
      %p60 = scmp.ne.s32.totalorder %s49, %s52
      %p61 = scmp.eq.s32.totalorder %s23, 1
      %p62 = por %p60, %p61
      %p63 = scmp.ne.s32.totalorder %s52, %s53
      %p64 = scmp.eq.s32.totalorder %s23, 0
      %p65 = por %p63, %p64
      %p66 = scmp.ne.s32.totalorder %s52, %s53
      %p67 = scmp.eq.s32.totalorder %s24, 1
      %p68 = por %p66, %p67
      %p70 = scmp.ne.s32.totalorder %s53, %s69
      %p71 = scmp.eq.s32.totalorder %s24, 0
      %p72 = por %p70, %p71
      %s73 = ssub.s32 %s27, %s36
      %s74 = ssub.s32 %s25, %s44
      %s75 = sor.u32 %s73, %s74
      %p76 = scmp.eq.s32.totalorder %s75, 0
      %s78 = sadd.s32 %s77, 1
      %s79 = scalar_select %p76, %s77, %s78
      %p82 = pneg %p76
      %p83 = scmp.eq.s32.totalorder %s18, 1
      %p84 = por %p82, %p83
      %p85 = scmp.ne.s32.totalorder %s77, %s80
      %p86 = scmp.eq.s32.totalorder %s18, 0
      %p87 = por %p85, %p86
      %p88 = scmp.ne.s32.totalorder %s77, %s80
      %p89 = scmp.eq.s32.totalorder %s23, 1
      %p90 = por %p88, %p89
      %p91 = scmp.ne.s32.totalorder %s80, %s81
      %p92 = scmp.eq.s32.totalorder %s23, 0
      %p93 = por %p91, %p92
      %p94 = scmp.ne.s32.totalorder %s80, %s81
      %p95 = scmp.eq.s32.totalorder %s24, 1
      %p96 = por %p94, %p95
      %p98 = scmp.ne.s32.totalorder %s81, %s97
      %p99 = scmp.eq.s32.totalorder %s24, 0
      %p100 = por %p98, %p99
      %s101 = ssub.s32 %s27, %s36
      %s102 = ssub.s32 %s25, %s44
      %s103 = sor.u32 %s101, %s102
      %p104 = scmp.eq.s32.totalorder %s103, 0
      %s106 = sadd.s32 %s105, 1
      %s107 = scalar_select %p104, %s105, %s106
      %p110 = pneg %p104
      %p111 = scmp.eq.s32.totalorder %s18, 1
      %p112 = por %p110, %p111
      %p113 = scmp.ne.s32.totalorder %s105, %s108
      %p114 = scmp.eq.s32.totalorder %s18, 0
      %p115 = por %p113, %p114
      %p116 = scmp.ne.s32.totalorder %s105, %s108
      %p117 = scmp.eq.s32.totalorder %s23, 1
      %p118 = por %p116, %p117
      %p119 = scmp.ne.s32.totalorder %s108, %s109
      %p120 = scmp.eq.s32.totalorder %s23, 0
      %p121 = por %p119, %p120
      %p122 = scmp.ne.s32.totalorder %s108, %s109
      %p123 = scmp.eq.s32.totalorder %s24, 1
      %p124 = por %p122, %p123
      %p126 = scmp.ne.s32.totalorder %s109, %s125
      %p127 = scmp.eq.s32.totalorder %s24, 0
      %p128 = por %p126, %p127
      %s129 = ssub.s32 %s26, %s40
      %s130 = ssub.s32 %s27, %s36
      %s131 = sor.u32 %s129, %s130
      %s132 = ssub.s32 %s25, %s44
      %s133 = sor.u32 %s131, %s132
      %p134 = scmp.eq.s32.totalorder %s133, 0
      %s136 = sadd.s32 %s135, 1
      %s137 = scalar_select %p134, %s135, %s136
      %p140 = pneg %p134
      %p141 = scmp.eq.s32.totalorder %s18, 1
      %p142 = por %p140, %p141
      %p143 = scmp.ne.s32.totalorder %s135, %s138
      %p144 = scmp.eq.s32.totalorder %s18, 0
      %p145 = por %p143, %p144
      %p146 = scmp.ne.s32.totalorder %s135, %s138
      %p147 = scmp.eq.s32.totalorder %s23, 1
      %p148 = por %p146, %p147
      %p149 = scmp.ne.s32.totalorder %s138, %s139
      %p150 = scmp.eq.s32.totalorder %s23, 0
      %p151 = por %p149, %p150
      %p152 = scmp.ne.s32.totalorder %s138, %s139
      %p153 = scmp.eq.s32.totalorder %s24, 1
      %p154 = por %p152, %p153
      %p156 = scmp.ne.s32.totalorder %s139, %s155
      %p157 = scmp.eq.s32.totalorder %s24, 0
      %p158 = por %p156, %p157
      %s159 = ssub.s32 %s26, %s40
      %s160 = ssub.s32 %s25, %s44
      %s161 = sor.u32 %s159, %s160
      %p162 = scmp.eq.s32.totalorder %s161, 0
      %s164 = sadd.s32 %s163, 1
      %s165 = scalar_select %p162, %s163, %s164
      %p168 = pneg %p162
      %p169 = scmp.eq.s32.totalorder %s18, 1
      %p170 = por %p168, %p169
      %p171 = scmp.ne.s32.totalorder %s163, %s166
      %p172 = scmp.eq.s32.totalorder %s18, 0
      %p173 = por %p171, %p172
      %p174 = scmp.ne.s32.totalorder %s163, %s166
      %p175 = scmp.eq.s32.totalorder %s23, 1
      %p176 = por %p174, %p175
      %p177 = scmp.ne.s32.totalorder %s166, %s167
      %p178 = scmp.eq.s32.totalorder %s23, 0
      %p179 = por %p177, %p178
      %p180 = scmp.ne.s32.totalorder %s166, %s167
      %p181 = scmp.eq.s32.totalorder %s24, 1
      %p182 = por %p180, %p181
      %p184 = scmp.ne.s32.totalorder %s167, %s183
      %p185 = scmp.eq.s32.totalorder %s24, 0
      %p186 = por %p184, %p185
      %s187 = ssub.s32 %s26, %s40
      %s188 = ssub.s32 %s25, %s44
      %s189 = sor.u32 %s187, %s188
      %p190 = scmp.eq.s32.totalorder %s189, 0
      %s192 = sadd.s32 %s191, 1
      %s193 = scalar_select %p190, %s191, %s192
      %p196 = pneg %p190
      %p197 = scmp.eq.s32.totalorder %s18, 1
      %p198 = por %p196, %p197
      %p199 = scmp.ne.s32.totalorder %s191, %s194
      %p200 = scmp.eq.s32.totalorder %s18, 0
      %p201 = por %p199, %p200
      %p202 = scmp.ne.s32.totalorder %s191, %s194
      %p203 = scmp.eq.s32.totalorder %s23, 1
      %p204 = por %p202, %p203
      %p205 = scmp.ne.s32.totalorder %s194, %s195
      %p206 = scmp.eq.s32.totalorder %s23, 0
      %p207 = por %p205, %p206
      %p208 = scmp.ne.s32.totalorder %s194, %s195
      %p209 = scmp.eq.s32.totalorder %s24, 1
      %p210 = por %p208, %p209
      %p212 = scmp.ne.s32.totalorder %s195, %s211
      %p213 = scmp.eq.s32.totalorder %s24, 0
      %p214 = por %p212, %p213
      %p215 = scmp.le.s32.totalorder 1, %s18
      %p216 = scmp.lt.s32.totalorder %s18, 3
      %p217 = pnand %p215, %p216
      %p218 = pneg %p217
      // Predicated region
      $region9: #{vcl_forward_with_eps.1} parent=5 // pred_check
        _
      $region10: #{vcl_forward_with_eps.1} parent=5 // pred_check_branch
        %220 = sbr.rel (%p217) target = $region12
      $region11: #{vcl_forward_with_eps.1} parent=5 // pred_region
        %s221 = ssub.s32 %s18, 1
        // Predicated region
        $region13: #{vcl_forward_with_eps.1} parent=11 // pred_check
          %p222 = pneg %p93
        $region14: #{vcl_forward_with_eps.1} parent=11 // pred_check_branch
          %224 = sbr.rel (%p222) target = $region16
        $region15: #{vcl_forward_with_eps.1} parent=11 // pred_region
          %s225 = smul.u32 32, %s30
          %s226 = smul.u32 2, %s28
          %s228 = ssub.s32 8192, 8192
          %229 = vsyncadd [#allocation7], %s228
          %s230 = smul.addr %s225, 2
          %s231 = sadd.s32 %s226, %s230
          %s232 = smul.addr %s231, 128
          %s233 = scalar_lea.hbm %s1, %s232
          %s234 = sshll.u32 [#allocation6], 4
          %s235 = int_to_ptr.vmem [resolvable:$true] %s234
          %240 = dma.hbm_to_vmem [thread:$0]  %s233, 8192, %s235, [#allocation7], 256, 256, 16
        $region16: #{vcl_forward_with_eps.1} parent=11 // pred_fallthru
          _
        // Predicated region
        $region17: #{vcl_forward_with_eps.1} parent=11 // pred_check
          %p241 = pneg %p121
        $region18: #{vcl_forward_with_eps.1} parent=11 // pred_check_branch
          %243 = sbr.rel (%p241) target = $region20
        $region19: #{vcl_forward_with_eps.1} parent=11 // pred_region
          %s244 = smul.u32 32, %s30
          %s245 = smul.u32 2, %s28
          %p246 = scmp.lt.s32.totalorder %s244, 31
          %s247 = scalar_select %p246, %s244, 31
          %p248 = scmp.lt.s32.totalorder %s245, 1
          %s249 = scalar_select %p248, %s245, 1
          %s250 = smul.addr %s247, 2
          %s251 = sadd.s32 %s249, %s250
          %s252 = smul.addr %s251, 8
          %s253 = scalar_lea.vmem %s2, %s252
          %s254 = smul.u32 32, %s30
          %s255 = smul.u32 2, %s28
        $region20: #{vcl_forward_with_eps.1} parent=11 // pred_fallthru
          _
      $region12: #{vcl_forward_with_eps.1} parent=5 // pred_fallthru
        _
      %p256 = scmp.lt.s32.totalorder %s18, 2
      // Predicated region
      $region21: #{vcl_forward_with_eps.1} parent=5 // pred_check
        %p257 = pneg %p256
      $region22: #{vcl_forward_with_eps.1} parent=5 // pred_check_branch
        %259 = sbr.rel (%p257) target = $region24
      $region23: #{vcl_forward_with_eps.1} parent=5 // pred_region
        // Predicated region
        $region25: #{vcl_forward_with_eps.1} parent=23 // pred_check
          %p260 = pneg %p59
        $region26: #{vcl_forward_with_eps.1} parent=23 // pred_check_branch
          %262 = sbr.rel (%p260) target = $region28
        $region27: #{vcl_forward_with_eps.1} parent=23 // pred_region
          %s263 = sand.u32 %s49, 1
          %s264 = scalar_lea.sflag [#allocation4], %s263
          %s265 = sand.u32 %s49, 1
          %s266 = smul.addr %s265, 128
          %s267 = scalar_lea.vmem [#allocation3], %s266
          %s268 = smul.u32 2, %s27
          %s270 = ssub.s32 2048, 2048
          %271 = vsyncadd %s264, %s270
          %s272 = smul.addr %s26, 16
          %s273 = sadd.s32 %s268, %s272
          %s274 = smul.addr %s273, 128
          %s275 = scalar_lea.hbm %s0, %s274
          %s276 = sshll.u32 %s267, 4
          %s277 = int_to_ptr.vmem [resolvable:$true] %s276
          %282 = dma.hbm_to_vmem [thread:$0]  %s275, 2048, %s277, %s264, 256, 256, 16
        $region28: #{vcl_forward_with_eps.1} parent=23 // pred_fallthru
          _
        // Predicated region
        $region29: #{vcl_forward_with_eps.1} parent=23 // pred_check
          %p283 = pneg %p145
        $region30: #{vcl_forward_with_eps.1} parent=23 // pred_check_branch
          %285 = sbr.rel (%p283) target = $region32
        $region31: #{vcl_forward_with_eps.1} parent=23 // pred_region
          %s286 = smul.u32 32, %s27
          %s287 = smul.u32 2, %s25
          %p288 = scmp.lt.s32.totalorder %s26, 1
          %s289 = scalar_select %p288, %s26, 1
          %p290 = scmp.lt.s32.totalorder %s286, 31
          %s291 = scalar_select %p290, %s286, 31
          %p292 = scmp.lt.s32.totalorder %s287, 1
          %s293 = scalar_select %p292, %s287, 1
          %s294 = smul.addr %s291, 2
          %s295 = sadd.s32 %s293, %s294
          %s296 = smul.addr %s289, 64
          %s297 = sadd.s32 %s295, %s296
          %s298 = smul.addr %s297, 8
          %s299 = scalar_lea.vmem %s3, %s298
          %s300 = smul.u32 32, %s27
          %s301 = smul.u32 2, %s25
        $region32: #{vcl_forward_with_eps.1} parent=23 // pred_fallthru
          _
        // Predicated region
        $region33: #{vcl_forward_with_eps.1} parent=23 // pred_check
          %p302 = pneg %p173
        $region34: #{vcl_forward_with_eps.1} parent=23 // pred_check_branch
          %304 = sbr.rel (%p302) target = $region36
        $region35: #{vcl_forward_with_eps.1} parent=23 // pred_region
          %s305 = smul.u32 2, %s25
          %p306 = scmp.lt.s32.totalorder %s26, 1
          %s307 = scalar_select %p306, %s26, 1
          %p308 = scmp.lt.s32.totalorder %s305, 1
          %s309 = scalar_select %p308, %s305, 1
          %s310 = smul.addr %s307, 2
          %s311 = sadd.s32 %s309, %s310
          %s312 = scalar_lea.vmem %s4, %s311
          %s313 = smul.u32 2, %s25
        $region36: #{vcl_forward_with_eps.1} parent=23 // pred_fallthru
          _
      $region24: #{vcl_forward_with_eps.1} parent=5 // pred_fallthru
        _
      %p314 = scmp.le.s32.totalorder 1, %s18
      %p315 = scmp.lt.s32.totalorder %s18, 3
      %p316 = pnand %p314, %p315
      %p317 = pneg %p316
      // Predicated region
      $region37: #{vcl_forward_with_eps.1} parent=5 // pred_check
        _
      $region38: #{vcl_forward_with_eps.1} parent=5 // pred_check_branch
        %319 = sbr.rel (%p316) target = $region40
      $region39: #{vcl_forward_with_eps.1} parent=5 // pred_region
        %s320 = ssub.s32 %s18, 1
        %s321 = sand.u32 %s52, 1
        %s322 = scalar_lea.sflag [#allocation4], %s321
        %s323 = sand.u32 %s52, 1
        %s324 = smul.addr %s323, 128
        %s325 = scalar_lea.vmem [#allocation3], %s324
        // Predicated region
        $region41: #{vcl_forward_with_eps.1} parent=39 // pred_check
          %p326 = pneg %p65
        $region42: #{vcl_forward_with_eps.1} parent=39 // pred_check_branch
          %328 = sbr.rel (%p326) target = $region44
        $region43: #{vcl_forward_with_eps.1} parent=39 // pred_region
          %329 = dma.done %s322, 2048
        $region44: #{vcl_forward_with_eps.1} parent=39 // pred_fallthru
          _
        // Predicated region
        $region45: #{vcl_forward_with_eps.1} parent=39 // pred_check
          %p330 = pneg %p93
        $region46: #{vcl_forward_with_eps.1} parent=39 // pred_check_branch
          %332 = sbr.rel (%p330) target = $region48
        $region47: #{vcl_forward_with_eps.1} parent=39 // pred_region
          %333 = dma.done [#allocation7], 8192
        $region48: #{vcl_forward_with_eps.1} parent=39 // pred_fallthru
          _
        %s334 = sand.u32 %s52, 1
        %s335 = scalar_lea.sflag [#allocation4], %s334
        %s336 = sand.u32 %s52, 1
        %s337 = smul.addr %s336, 128
        %s338 = scalar_lea.vmem [#allocation3], %s337
        %p339 = pneg %p65
        %p340 = pneg %p62
        %p341 = pneg %p93
        %p342 = pneg %p90
        %s343 = smul.u32 32, %s30
        %s344 = smul.u32 2, %s28
        %p345 = scmp.lt.s32.totalorder %s343, 31
        %s346 = scalar_select %p345, %s343, 31
        %p347 = scmp.lt.s32.totalorder %s344, 1
        %s348 = scalar_select %p347, %s344, 1
        %s349 = smul.addr %s346, 2
        %s350 = sadd.s32 %s348, %s349
        %s351 = smul.addr %s350, 8
        %s352 = scalar_lea.vmem %s2, %s351
        %p353 = pneg %p121
        %p354 = pneg %p118
        %s355 = smul.u32 32, %s30
        %s356 = smul.u32 2, %s28
        %p357 = scmp.lt.s32.totalorder %s29, 1
        %s358 = scalar_select %p357, %s29, 1
        %p359 = scmp.lt.s32.totalorder %s355, 31
        %s360 = scalar_select %p359, %s355, 31
        %p361 = scmp.lt.s32.totalorder %s356, 1
        %s362 = scalar_select %p361, %s356, 1
        %s363 = smul.addr %s360, 2
        %s364 = sadd.s32 %s362, %s363
        %s365 = smul.addr %s358, 64
        %s366 = sadd.s32 %s364, %s365
        %s367 = smul.addr %s366, 8
        %s368 = scalar_lea.vmem %s3, %s367
        %p369 = pneg %p151
        %p370 = pneg %p148
        %s371 = smul.u32 2, %s28
        %p372 = scmp.lt.s32.totalorder %s29, 1
        %s373 = scalar_select %p372, %s29, 1
        %p374 = scmp.lt.s32.totalorder %s371, 1
        %s375 = scalar_select %p374, %s371, 1
        %s376 = smul.addr %s373, 2
        %s377 = sadd.s32 %s375, %s376
        %s378 = scalar_lea.vmem %s4, %s377
        %p379 = pneg %p179
        %p380 = pneg %p176
        %p381 = pneg %p207
        %p382 = pneg %p204
        %s383 = sand.u32 %s194, 1
        %s384 = scalar_lea.sflag [#allocation5], %s383
        %s385 = sand.u32 %s194, 1
        %s386 = smul.addr %s385, 128
        %s387 = scalar_lea.vmem [#allocation8], %s386
        %s388 = smul.u32 2, %s30
        %s389 = smul.u32 32, %s30
        %s390 = smul.u32 2, %s28
        %s391 = smul.u32 32, %s30
        %s392 = smul.u32 2, %s28
        %p393 = scmp.lt.s32.totalorder %s391, 31
        %s394 = scalar_select %p393, %s391, 31
        %p395 = scmp.lt.s32.totalorder %s392, 1
        %s396 = scalar_select %p395, %s392, 1
        %s397 = smul.addr %s394, 2
        %s398 = sadd.s32 %s396, %s397
        %s399 = smul.addr %s398, 8
        %s400 = scalar_lea.vmem %s2, %s399
        %s401 = smul.u32 32, %s30
        %s402 = smul.u32 2, %s28
        %s403 = smul.u32 32, %s30
        %s404 = smul.u32 2, %s28
        %p405 = scmp.lt.s32.totalorder %s29, 1
        %s406 = scalar_select %p405, %s29, 1
        %p407 = scmp.lt.s32.totalorder %s403, 31
        %s408 = scalar_select %p407, %s403, 31
        %p409 = scmp.lt.s32.totalorder %s404, 1
        %s410 = scalar_select %p409, %s404, 1
        %s411 = smul.addr %s408, 2
        %s412 = sadd.s32 %s410, %s411
        %s413 = smul.addr %s406, 64
        %s414 = sadd.s32 %s412, %s413
        %s415 = smul.addr %s414, 8
        %s416 = scalar_lea.vmem %s3, %s415
        %s417 = smul.u32 32, %s30
        %s418 = smul.u32 2, %s28
        %s419 = smul.u32 2, %s28
        %p420 = scmp.lt.s32.totalorder %s29, 1
        %s421 = scalar_select %p420, %s29, 1
        %p422 = scmp.lt.s32.totalorder %s419, 1
        %s423 = scalar_select %p422, %s419, 1
        %s424 = smul.addr %s421, 2
        %s425 = sadd.s32 %s423, %s424
        %s426 = scalar_lea.vmem %s4, %s425
        %s427 = smul.u32 2, %s28
        %s428 = smul.u32 2, %s28
        %p429 = scmp.eq.s32.totalorder %s30, 0
        // Predicated region
        $region49: #{vcl_forward_with_eps.1} parent=39 // pred_check
          %p430 = pneg %p429
        $region50: #{vcl_forward_with_eps.1} parent=39 // pred_check_branch
          %432 = sbr.rel (%p430) target = $region52
        $region51: #{vcl_forward_with_eps.1} parent=39 // pred_region
          %433 = vst [vmem:[#allocation2] sm:$0xff] 0.0
          %434 = vst [vmem:[#allocation2 + $0x8] sm:$0xff] 0.0
          %435 = vst [vmem:[#allocation2 + $0x10] sm:$0xff] 0.0
          %436 = vst [vmem:[#allocation2 + $0x18] sm:$0xff] 0.0
          %437 = vst [vmem:[#allocation2 + $0x20] sm:$0xff] 0.0
          %438 = vst [vmem:[#allocation2 + $0x28] sm:$0xff] 0.0
          %439 = vst [vmem:[#allocation2 + $0x30] sm:$0xff] 0.0
          %440 = vst [vmem:[#allocation2 + $0x38] sm:$0xff] 0.0
          %441 = vst [vmem:[#allocation2 + $0x40] sm:$0xff] 0.0
          %442 = vst [vmem:[#allocation2 + $0x48] sm:$0xff] 0.0
          %443 = vst [vmem:[#allocation2 + $0x50] sm:$0xff] 0.0
          %444 = vst [vmem:[#allocation2 + $0x58] sm:$0xff] 0.0
          %445 = vst [vmem:[#allocation2 + $0x60] sm:$0xff] 0.0
          %446 = vst [vmem:[#allocation2 + $0x68] sm:$0xff] 0.0
          %447 = vst [vmem:[#allocation2 + $0x70] sm:$0xff] 0.0
          %448 = vst [vmem:[#allocation2 + $0x78] sm:$0xff] 0.0
        $region52: #{vcl_forward_with_eps.1} parent=39 // pred_fallthru
          _
        %v449 = vld [vmem:[#allocation6] sm:$0xff]
        %v450 = vld [vmem:[#allocation6 + $0x8] sm:$0xff]
        %v451 = vld [vmem:[#allocation6 + $0x10] sm:$0xff]
        %v452 = vld [vmem:[#allocation6 + $0x18] sm:$0xff]
        %v453 = vld [vmem:[#allocation6 + $0x20] sm:$0xff]
        %v454 = vld [vmem:[#allocation6 + $0x28] sm:$0xff]
        %v455 = vld [vmem:[#allocation6 + $0x30] sm:$0xff]
        %v456 = vld [vmem:[#allocation6 + $0x38] sm:$0xff]
        %v457 = vld [vmem:[#allocation6 + $0x40] sm:$0xff]
        %v458 = vld [vmem:[#allocation6 + $0x48] sm:$0xff]
        %v459 = vld [vmem:[#allocation6 + $0x50] sm:$0xff]
        %v460 = vld [vmem:[#allocation6 + $0x58] sm:$0xff]
        %v461 = vld [vmem:[#allocation6 + $0x60] sm:$0xff]
        %v462 = vld [vmem:[#allocation6 + $0x68] sm:$0xff]
        %v463 = vld [vmem:[#allocation6 + $0x70] sm:$0xff]
        %v464 = vld [vmem:[#allocation6 + $0x78] sm:$0xff]
        %v465 = vld [vmem:[#allocation6 + $0x80] sm:$0xff]
        %v466 = vld [vmem:[#allocation6 + $0x88] sm:$0xff]
        %v467 = vld [vmem:[#allocation6 + $0x90] sm:$0xff]
        %v468 = vld [vmem:[#allocation6 + $0x98] sm:$0xff]
        %v469 = vld [vmem:[#allocation6 + $0xa0] sm:$0xff]
        %v470 = vld [vmem:[#allocation6 + $0xa8] sm:$0xff]
        %v471 = vld [vmem:[#allocation6 + $0xb0] sm:$0xff]
        %v472 = vld [vmem:[#allocation6 + $0xb8] sm:$0xff]
        %v473 = vld [vmem:[#allocation6 + $0xc0] sm:$0xff]
        %v474 = vld [vmem:[#allocation6 + $0xc8] sm:$0xff]
        %v475 = vld [vmem:[#allocation6 + $0xd0] sm:$0xff]
        %v476 = vld [vmem:[#allocation6 + $0xd8] sm:$0xff]
        %v477 = vld [vmem:[#allocation6 + $0xe0] sm:$0xff]
        %v478 = vld [vmem:[#allocation6 + $0xe8] sm:$0xff]
        %v479 = vld [vmem:[#allocation6 + $0xf0] sm:$0xff]
        %v480 = vld [vmem:[#allocation6 + $0xf8] sm:$0xff]
        %v481 = vld [vmem:[#allocation6 + $0x100] sm:$0xff]
        %v482 = vld [vmem:[#allocation6 + $0x108] sm:$0xff]
        %v483 = vld [vmem:[#allocation6 + $0x110] sm:$0xff]
        %v484 = vld [vmem:[#allocation6 + $0x118] sm:$0xff]
        %v485 = vld [vmem:[#allocation6 + $0x120] sm:$0xff]
        %v486 = vld [vmem:[#allocation6 + $0x128] sm:$0xff]
        %v487 = vld [vmem:[#allocation6 + $0x130] sm:$0xff]
        %v488 = vld [vmem:[#allocation6 + $0x138] sm:$0xff]
        %v489 = vld [vmem:[#allocation6 + $0x140] sm:$0xff]
        %v490 = vld [vmem:[#allocation6 + $0x148] sm:$0xff]
        %v491 = vld [vmem:[#allocation6 + $0x150] sm:$0xff]
        %v492 = vld [vmem:[#allocation6 + $0x158] sm:$0xff]
        %v493 = vld [vmem:[#allocation6 + $0x160] sm:$0xff]
        %v494 = vld [vmem:[#allocation6 + $0x168] sm:$0xff]
        %v495 = vld [vmem:[#allocation6 + $0x170] sm:$0xff]
        %v496 = vld [vmem:[#allocation6 + $0x178] sm:$0xff]
        %v497 = vld [vmem:[#allocation6 + $0x180] sm:$0xff]
        %v498 = vld [vmem:[#allocation6 + $0x188] sm:$0xff]
        %v499 = vld [vmem:[#allocation6 + $0x190] sm:$0xff]
        %v500 = vld [vmem:[#allocation6 + $0x198] sm:$0xff]
        %v501 = vld [vmem:[#allocation6 + $0x1a0] sm:$0xff]
        %v502 = vld [vmem:[#allocation6 + $0x1a8] sm:$0xff]
        %v503 = vld [vmem:[#allocation6 + $0x1b0] sm:$0xff]
        %v504 = vld [vmem:[#allocation6 + $0x1b8] sm:$0xff]
        %v505 = vld [vmem:[#allocation6 + $0x1c0] sm:$0xff]
        %v506 = vld [vmem:[#allocation6 + $0x1c8] sm:$0xff]
        %v507 = vld [vmem:[#allocation6 + $0x1d0] sm:$0xff]
        %v508 = vld [vmem:[#allocation6 + $0x1d8] sm:$0xff]
        %v509 = vld [vmem:[#allocation6 + $0x1e0] sm:$0xff]
        %v510 = vld [vmem:[#allocation6 + $0x1e8] sm:$0xff]
        %v511 = vld [vmem:[#allocation6 + $0x1f0] sm:$0xff]
        %v512 = vld [vmem:[#allocation6 + $0x1f8] sm:$0xff]
        %v513 = vld [vmem:[%s400] sm:$0xff]
        %v514 = vld [vmem:[%s400 + $0x8] sm:$0xff]
        %v515 = vld [vmem:[%s400 + $0x10] sm:$0xff]
        %v516 = vld [vmem:[%s400 + $0x18] sm:$0xff]
        %v517 = vld [vmem:[%s400 + $0x20] sm:$0xff]
        %v518 = vld [vmem:[%s400 + $0x28] sm:$0xff]
        %v519 = vld [vmem:[%s400 + $0x30] sm:$0xff]
        %v520 = vld [vmem:[%s400 + $0x38] sm:$0xff]
        %v521 = vld [vmem:[%s400 + $0x40] sm:$0xff]
        %v522 = vld [vmem:[%s400 + $0x48] sm:$0xff]
        %v523 = vld [vmem:[%s400 + $0x50] sm:$0xff]
        %v524 = vld [vmem:[%s400 + $0x58] sm:$0xff]
        %v525 = vld [vmem:[%s400 + $0x60] sm:$0xff]
        %v526 = vld [vmem:[%s400 + $0x68] sm:$0xff]
        %v527 = vld [vmem:[%s400 + $0x70] sm:$0xff]
        %v528 = vld [vmem:[%s400 + $0x78] sm:$0xff]
        %v529 = vld [vmem:[%s400 + $0x80] sm:$0xff]
        %v530 = vld [vmem:[%s400 + $0x88] sm:$0xff]
        %v531 = vld [vmem:[%s400 + $0x90] sm:$0xff]
        %v532 = vld [vmem:[%s400 + $0x98] sm:$0xff]
        %v533 = vld [vmem:[%s400 + $0xa0] sm:$0xff]
        %v534 = vld [vmem:[%s400 + $0xa8] sm:$0xff]
        %v535 = vld [vmem:[%s400 + $0xb0] sm:$0xff]
        %v536 = vld [vmem:[%s400 + $0xb8] sm:$0xff]
        %v537 = vld [vmem:[%s400 + $0xc0] sm:$0xff]
        %v538 = vld [vmem:[%s400 + $0xc8] sm:$0xff]
        %v539 = vld [vmem:[%s400 + $0xd0] sm:$0xff]
        %v540 = vld [vmem:[%s400 + $0xd8] sm:$0xff]
        %v541 = vld [vmem:[%s400 + $0xe0] sm:$0xff]
        %v542 = vld [vmem:[%s400 + $0xe8] sm:$0xff]
        %v543 = vld [vmem:[%s400 + $0xf0] sm:$0xff]
        %v544 = vld [vmem:[%s400 + $0xf8] sm:$0xff]
        %v545 = vld [vmem:[%s400 + $0x100] sm:$0xff]
        %v546 = vld [vmem:[%s400 + $0x108] sm:$0xff]
        %v547 = vld [vmem:[%s400 + $0x110] sm:$0xff]
        %v548 = vld [vmem:[%s400 + $0x118] sm:$0xff]
        %v549 = vld [vmem:[%s400 + $0x120] sm:$0xff]
        %v550 = vld [vmem:[%s400 + $0x128] sm:$0xff]
        %v551 = vld [vmem:[%s400 + $0x130] sm:$0xff]
        %v552 = vld [vmem:[%s400 + $0x138] sm:$0xff]
        %v553 = vld [vmem:[%s400 + $0x140] sm:$0xff]
        %v554 = vld [vmem:[%s400 + $0x148] sm:$0xff]
        %v555 = vld [vmem:[%s400 + $0x150] sm:$0xff]
        %v556 = vld [vmem:[%s400 + $0x158] sm:$0xff]
        %v557 = vld [vmem:[%s400 + $0x160] sm:$0xff]
        %v558 = vld [vmem:[%s400 + $0x168] sm:$0xff]
        %v559 = vld [vmem:[%s400 + $0x170] sm:$0xff]
        %v560 = vld [vmem:[%s400 + $0x178] sm:$0xff]
        %v561 = vld [vmem:[%s400 + $0x180] sm:$0xff]
        %v562 = vld [vmem:[%s400 + $0x188] sm:$0xff]
        %v563 = vld [vmem:[%s400 + $0x190] sm:$0xff]
        %v564 = vld [vmem:[%s400 + $0x198] sm:$0xff]
        %v565 = vld [vmem:[%s400 + $0x1a0] sm:$0xff]
        %v566 = vld [vmem:[%s400 + $0x1a8] sm:$0xff]
        %v567 = vld [vmem:[%s400 + $0x1b0] sm:$0xff]
        %v568 = vld [vmem:[%s400 + $0x1b8] sm:$0xff]
        %v569 = vld [vmem:[%s400 + $0x1c0] sm:$0xff]
        %v570 = vld [vmem:[%s400 + $0x1c8] sm:$0xff]
        %v571 = vld [vmem:[%s400 + $0x1d0] sm:$0xff]
        %v572 = vld [vmem:[%s400 + $0x1d8] sm:$0xff]
        %v573 = vld [vmem:[%s400 + $0x1e0] sm:$0xff]
        %v574 = vld [vmem:[%s400 + $0x1e8] sm:$0xff]
        %v575 = vld [vmem:[%s400 + $0x1f0] sm:$0xff]
        %v576 = vld [vmem:[%s400 + $0x1f8] sm:$0xff]
        %v577 = vld [vmem:[%s416] sm:$0xff]
        %v578 = vld [vmem:[%s416 + $0x8] sm:$0xff]
        %v579 = vld [vmem:[%s416 + $0x10] sm:$0xff]
        %v580 = vld [vmem:[%s416 + $0x18] sm:$0xff]
        %v581 = vld [vmem:[%s416 + $0x20] sm:$0xff]
        %v582 = vld [vmem:[%s416 + $0x28] sm:$0xff]
        %v583 = vld [vmem:[%s416 + $0x30] sm:$0xff]
        %v584 = vld [vmem:[%s416 + $0x38] sm:$0xff]
        %v585 = vld [vmem:[%s416 + $0x40] sm:$0xff]
        %v586 = vld [vmem:[%s416 + $0x48] sm:$0xff]
        %v587 = vld [vmem:[%s416 + $0x50] sm:$0xff]
        %v588 = vld [vmem:[%s416 + $0x58] sm:$0xff]
        %v589 = vld [vmem:[%s416 + $0x60] sm:$0xff]
        %v590 = vld [vmem:[%s416 + $0x68] sm:$0xff]
        %v591 = vld [vmem:[%s416 + $0x70] sm:$0xff]
        %v592 = vld [vmem:[%s416 + $0x78] sm:$0xff]
        %v593 = vld [vmem:[%s416 + $0x80] sm:$0xff]
        %v594 = vld [vmem:[%s416 + $0x88] sm:$0xff]
        %v595 = vld [vmem:[%s416 + $0x90] sm:$0xff]
        %v596 = vld [vmem:[%s416 + $0x98] sm:$0xff]
        %v597 = vld [vmem:[%s416 + $0xa0] sm:$0xff]
        %v598 = vld [vmem:[%s416 + $0xa8] sm:$0xff]
        %v599 = vld [vmem:[%s416 + $0xb0] sm:$0xff]
        %v600 = vld [vmem:[%s416 + $0xb8] sm:$0xff]
        %v601 = vld [vmem:[%s416 + $0xc0] sm:$0xff]
        %v602 = vld [vmem:[%s416 + $0xc8] sm:$0xff]
        %v603 = vld [vmem:[%s416 + $0xd0] sm:$0xff]
        %v604 = vld [vmem:[%s416 + $0xd8] sm:$0xff]
        %v605 = vld [vmem:[%s416 + $0xe0] sm:$0xff]
        %v606 = vld [vmem:[%s416 + $0xe8] sm:$0xff]
        %v607 = vld [vmem:[%s416 + $0xf0] sm:$0xff]
        %v608 = vld [vmem:[%s416 + $0xf8] sm:$0xff]
        %v609 = vld [vmem:[%s416 + $0x100] sm:$0xff]
        %v610 = vld [vmem:[%s416 + $0x108] sm:$0xff]
        %v611 = vld [vmem:[%s416 + $0x110] sm:$0xff]
        %v612 = vld [vmem:[%s416 + $0x118] sm:$0xff]
        %v613 = vld [vmem:[%s416 + $0x120] sm:$0xff]
        %v614 = vld [vmem:[%s416 + $0x128] sm:$0xff]
        %v615 = vld [vmem:[%s416 + $0x130] sm:$0xff]
        %v616 = vld [vmem:[%s416 + $0x138] sm:$0xff]
        %v617 = vld [vmem:[%s416 + $0x140] sm:$0xff]
        %v618 = vld [vmem:[%s416 + $0x148] sm:$0xff]
        %v619 = vld [vmem:[%s416 + $0x150] sm:$0xff]
        %v620 = vld [vmem:[%s416 + $0x158] sm:$0xff]
        %v621 = vld [vmem:[%s416 + $0x160] sm:$0xff]
        %v622 = vld [vmem:[%s416 + $0x168] sm:$0xff]
        %v623 = vld [vmem:[%s416 + $0x170] sm:$0xff]
        %v624 = vld [vmem:[%s416 + $0x178] sm:$0xff]
        %v625 = vld [vmem:[%s416 + $0x180] sm:$0xff]
        %v626 = vld [vmem:[%s416 + $0x188] sm:$0xff]
        %v627 = vld [vmem:[%s416 + $0x190] sm:$0xff]
        %v628 = vld [vmem:[%s416 + $0x198] sm:$0xff]
        %v629 = vld [vmem:[%s416 + $0x1a0] sm:$0xff]
        %v630 = vld [vmem:[%s416 + $0x1a8] sm:$0xff]
        %v631 = vld [vmem:[%s416 + $0x1b0] sm:$0xff]
        %v632 = vld [vmem:[%s416 + $0x1b8] sm:$0xff]
        %v633 = vld [vmem:[%s416 + $0x1c0] sm:$0xff]
        %v634 = vld [vmem:[%s416 + $0x1c8] sm:$0xff]
        %v635 = vld [vmem:[%s416 + $0x1d0] sm:$0xff]
        %v636 = vld [vmem:[%s416 + $0x1d8] sm:$0xff]
        %v637 = vld [vmem:[%s416 + $0x1e0] sm:$0xff]
        %v638 = vld [vmem:[%s416 + $0x1e8] sm:$0xff]
        %v639 = vld [vmem:[%s416 + $0x1f0] sm:$0xff]
        %v640 = vld [vmem:[%s416 + $0x1f8] sm:$0xff]
        %v641 = vmul.f32 %v513, %v577
        %v642 = vmul.f32 %v514, %v578
        %v643 = vmul.f32 %v515, %v579
        %v644 = vmul.f32 %v516, %v580
        %v645 = vmul.f32 %v517, %v581
        %v646 = vmul.f32 %v518, %v582
        %v647 = vmul.f32 %v519, %v583
        %v648 = vmul.f32 %v520, %v584
        %v649 = vmul.f32 %v521, %v585
        %v650 = vmul.f32 %v522, %v586
        %v651 = vmul.f32 %v523, %v587
        %v652 = vmul.f32 %v524, %v588
        %v653 = vmul.f32 %v525, %v589
        %v654 = vmul.f32 %v526, %v590
        %v655 = vmul.f32 %v527, %v591
        %v656 = vmul.f32 %v528, %v592
        %v657 = vmul.f32 %v529, %v593
        %v658 = vmul.f32 %v530, %v594
        %v659 = vmul.f32 %v531, %v595
        %v660 = vmul.f32 %v532, %v596
        %v661 = vmul.f32 %v533, %v597
        %v662 = vmul.f32 %v534, %v598
        %v663 = vmul.f32 %v535, %v599
        %v664 = vmul.f32 %v536, %v600
        %v665 = vmul.f32 %v537, %v601
        %v666 = vmul.f32 %v538, %v602
        %v667 = vmul.f32 %v539, %v603
        %v668 = vmul.f32 %v540, %v604
        %v669 = vmul.f32 %v541, %v605
        %v670 = vmul.f32 %v542, %v606
        %v671 = vmul.f32 %v543, %v607
        %v672 = vmul.f32 %v544, %v608
        %v673 = vmul.f32 %v545, %v609
        %v674 = vmul.f32 %v546, %v610
        %v675 = vmul.f32 %v547, %v611
        %v676 = vmul.f32 %v548, %v612
        %v677 = vmul.f32 %v549, %v613
        %v678 = vmul.f32 %v550, %v614
        %v679 = vmul.f32 %v551, %v615
        %v680 = vmul.f32 %v552, %v616
        %v681 = vmul.f32 %v553, %v617
        %v682 = vmul.f32 %v554, %v618
        %v683 = vmul.f32 %v555, %v619
        %v684 = vmul.f32 %v556, %v620
        %v685 = vmul.f32 %v557, %v621
        %v686 = vmul.f32 %v558, %v622
        %v687 = vmul.f32 %v559, %v623
        %v688 = vmul.f32 %v560, %v624
        %v689 = vmul.f32 %v561, %v625
        %v690 = vmul.f32 %v562, %v626
        %v691 = vmul.f32 %v563, %v627
        %v692 = vmul.f32 %v564, %v628
        %v693 = vmul.f32 %v565, %v629
        %v694 = vmul.f32 %v566, %v630
        %v695 = vmul.f32 %v567, %v631
        %v696 = vmul.f32 %v568, %v632
        %v697 = vmul.f32 %v569, %v633
        %v698 = vmul.f32 %v570, %v634
        %v699 = vmul.f32 %v571, %v635
        %v700 = vmul.f32 %v572, %v636
        %v701 = vmul.f32 %v573, %v637
        %v702 = vmul.f32 %v574, %v638
        %v703 = vmul.f32 %v575, %v639
        %v704 = vmul.f32 %v576, %v640
        %v705 = vadd.f32 %v449, %v641
        %v706 = vadd.f32 %v450, %v642
        %v707 = vadd.f32 %v451, %v643
        %v708 = vadd.f32 %v452, %v644
        %v709 = vadd.f32 %v453, %v645
        %v710 = vadd.f32 %v454, %v646
        %v711 = vadd.f32 %v455, %v647
        %v712 = vadd.f32 %v456, %v648
        %v713 = vadd.f32 %v457, %v649
        %v714 = vadd.f32 %v458, %v650
        %v715 = vadd.f32 %v459, %v651
        %v716 = vadd.f32 %v460, %v652
        %v717 = vadd.f32 %v461, %v653
        %v718 = vadd.f32 %v462, %v654
        %v719 = vadd.f32 %v463, %v655
        %v720 = vadd.f32 %v464, %v656
        %v721 = vadd.f32 %v465, %v657
        %v722 = vadd.f32 %v466, %v658
        %v723 = vadd.f32 %v467, %v659
        %v724 = vadd.f32 %v468, %v660
        %v725 = vadd.f32 %v469, %v661
        %v726 = vadd.f32 %v470, %v662
        %v727 = vadd.f32 %v471, %v663
        %v728 = vadd.f32 %v472, %v664
        %v729 = vadd.f32 %v473, %v665
        %v730 = vadd.f32 %v474, %v666
        %v731 = vadd.f32 %v475, %v667
        %v732 = vadd.f32 %v476, %v668
        %v733 = vadd.f32 %v477, %v669
        %v734 = vadd.f32 %v478, %v670
        %v735 = vadd.f32 %v479, %v671
        %v736 = vadd.f32 %v480, %v672
        %v737 = vadd.f32 %v481, %v673
        %v738 = vadd.f32 %v482, %v674
        %v739 = vadd.f32 %v483, %v675
        %v740 = vadd.f32 %v484, %v676
        %v741 = vadd.f32 %v485, %v677
        %v742 = vadd.f32 %v486, %v678
        %v743 = vadd.f32 %v487, %v679
        %v744 = vadd.f32 %v488, %v680
        %v745 = vadd.f32 %v489, %v681
        %v746 = vadd.f32 %v490, %v682
        %v747 = vadd.f32 %v491, %v683
        %v748 = vadd.f32 %v492, %v684
        %v749 = vadd.f32 %v493, %v685
        %v750 = vadd.f32 %v494, %v686
        %v751 = vadd.f32 %v495, %v687
        %v752 = vadd.f32 %v496, %v688
        %v753 = vadd.f32 %v497, %v689
        %v754 = vadd.f32 %v498, %v690
        %v755 = vadd.f32 %v499, %v691
        %v756 = vadd.f32 %v500, %v692
        %v757 = vadd.f32 %v501, %v693
        %v758 = vadd.f32 %v502, %v694
        %v759 = vadd.f32 %v503, %v695
        %v760 = vadd.f32 %v504, %v696
        %v761 = vadd.f32 %v505, %v697
        %v762 = vadd.f32 %v506, %v698
        %v763 = vadd.f32 %v507, %v699
        %v764 = vadd.f32 %v508, %v700
        %v765 = vadd.f32 %v509, %v701
        %v766 = vadd.f32 %v510, %v702
        %v767 = vadd.f32 %v511, %v703
        %v768 = vadd.f32 %v512, %v704
        %v769 = vld [vmem:[#allocation2] sm:$0xff]
        %v770 = vld [vmem:[#allocation2 + $0x8] sm:$0xff]
        %v771 = vld [vmem:[#allocation2 + $0x10] sm:$0xff]
        %v772 = vld [vmem:[#allocation2 + $0x18] sm:$0xff]
        %v773 = vld [vmem:[#allocation2 + $0x20] sm:$0xff]
        %v774 = vld [vmem:[#allocation2 + $0x28] sm:$0xff]
        %v775 = vld [vmem:[#allocation2 + $0x30] sm:$0xff]
        %v776 = vld [vmem:[#allocation2 + $0x38] sm:$0xff]
        %v777 = vld [vmem:[#allocation2 + $0x40] sm:$0xff]
        %v778 = vld [vmem:[#allocation2 + $0x48] sm:$0xff]
        %v779 = vld [vmem:[#allocation2 + $0x50] sm:$0xff]
        %v780 = vld [vmem:[#allocation2 + $0x58] sm:$0xff]
        %v781 = vld [vmem:[#allocation2 + $0x60] sm:$0xff]
        %v782 = vld [vmem:[#allocation2 + $0x68] sm:$0xff]
        %v783 = vld [vmem:[#allocation2 + $0x70] sm:$0xff]
        %v784 = vld [vmem:[#allocation2 + $0x78] sm:$0xff]
        %v785 = vld [vmem:[%s325] sm:$0xff]
        %v786 = vld [vmem:[%s325 + $0x8] sm:$0xff]
        %v787 = vld [vmem:[%s325 + $0x10] sm:$0xff]
        %v788 = vld [vmem:[%s325 + $0x18] sm:$0xff]
        %v789 = vld [vmem:[%s325 + $0x20] sm:$0xff]
        %v790 = vld [vmem:[%s325 + $0x28] sm:$0xff]
        %v791 = vld [vmem:[%s325 + $0x30] sm:$0xff]
        %v792 = vld [vmem:[%s325 + $0x38] sm:$0xff]
        %v793 = vld [vmem:[%s325 + $0x40] sm:$0xff]
        %v794 = vld [vmem:[%s325 + $0x48] sm:$0xff]
        %v795 = vld [vmem:[%s325 + $0x50] sm:$0xff]
        %v796 = vld [vmem:[%s325 + $0x58] sm:$0xff]
        %v797 = vld [vmem:[%s325 + $0x60] sm:$0xff]
        %v798 = vld [vmem:[%s325 + $0x68] sm:$0xff]
        %v799 = vld [vmem:[%s325 + $0x70] sm:$0xff]
        %v800 = vld [vmem:[%s325 + $0x78] sm:$0xff]
        %v801 = vpack.c.bf16 %v787, %v785
        %v802 = vpack.c.bf16 %v788, %v786
        %v803 = vpack.c.bf16 %v791, %v789
        %v804 = vpack.c.bf16 %v792, %v790
        %v805 = vpack.c.bf16 %v795, %v793
        %v806 = vpack.c.bf16 %v796, %v794
        %v807 = vpack.c.bf16 %v799, %v797
        %v808 = vpack.c.bf16 %v800, %v798
        %v809 = vpack.c.bf16 %v707, %v705
        %v810 = vpack.c.bf16 %v708, %v706
        %v811 = vpack.c.bf16 %v711, %v709
        %v812 = vpack.c.bf16 %v712, %v710
        %v813 = vpack.c.bf16 %v715, %v713
        %v814 = vpack.c.bf16 %v716, %v714
        %v815 = vpack.c.bf16 %v719, %v717
        %v816 = vpack.c.bf16 %v720, %v718
        %v817 = vpack.c.bf16 %v723, %v721
        %v818 = vpack.c.bf16 %v724, %v722
        %v819 = vpack.c.bf16 %v727, %v725
        %v820 = vpack.c.bf16 %v728, %v726
        %v821 = vpack.c.bf16 %v731, %v729
        %v822 = vpack.c.bf16 %v732, %v730
        %v823 = vpack.c.bf16 %v735, %v733
        %v824 = vpack.c.bf16 %v736, %v734
        %v825 = vpack.c.bf16 %v739, %v737
        %v826 = vpack.c.bf16 %v740, %v738
        %v827 = vpack.c.bf16 %v743, %v741
        %v828 = vpack.c.bf16 %v744, %v742
        %v829 = vpack.c.bf16 %v747, %v745
        %v830 = vpack.c.bf16 %v748, %v746
        %v831 = vpack.c.bf16 %v751, %v749
        %v832 = vpack.c.bf16 %v752, %v750
        %v833 = vpack.c.bf16 %v755, %v753
        %v834 = vpack.c.bf16 %v756, %v754
        %v835 = vpack.c.bf16 %v759, %v757
        %v836 = vpack.c.bf16 %v760, %v758
        %v837 = vpack.c.bf16 %v763, %v761
        %v838 = vpack.c.bf16 %v764, %v762
        %v839 = vpack.c.bf16 %v767, %v765
        %v840 = vpack.c.bf16 %v768, %v766
        %841 = vmatprep.subr.bf16.mxu0 %v824
        %842 = vmatpush1.bf16.msra.mxu0 %v823
        %843 = vmatprep.subr.bf16.mxu0 %v822
        %844 = vmatpush1.bf16.msra.mxu0 %v821
        %845 = vmatprep.subr.bf16.mxu0 %v820
        %846 = vmatpush1.bf16.msra.mxu0 %v819
        %847 = vmatprep.subr.bf16.mxu0 %v818
        %848 = vmatpush1.bf16.msra.mxu0 %v817
        %849 = vmatprep.subr.bf16.mxu0 %v816
        %850 = vmatpush1.bf16.msra.mxu0 %v815
        %851 = vmatprep.subr.bf16.mxu0 %v814
        %852 = vmatpush1.bf16.msra.mxu0 %v813
        %853 = vmatprep.subr.bf16.mxu0 %v812
        %854 = vmatpush1.bf16.msra.mxu0 %v811
        %855 = vmatprep.subr.bf16.mxu0 %v810
        %856 = vmatpush1.bf16.msra.mxu0 %v809
        %857 = vmatprep.subr.bf16.mxu0 %v840
        %858 = vmatpush2.bf16.msra.mxu0 %v839
        %859 = vmatprep.subr.bf16.mxu0 %v838
        %860 = vmatpush2.bf16.msra.mxu0 %v837
        %861 = vmatprep.subr.bf16.mxu0 %v836
        %862 = vmatpush2.bf16.msra.mxu0 %v835
        %863 = vmatprep.subr.bf16.mxu0 %v834
        %864 = vmatpush2.bf16.msra.mxu0 %v833
        %865 = vmatprep.subr.bf16.mxu0 %v832
        %866 = vmatpush2.bf16.msra.mxu0 %v831
        %867 = vmatprep.subr.bf16.mxu0 %v830
        %868 = vmatpush2.bf16.msra.mxu0 %v829
        %869 = vmatprep.subr.bf16.mxu0 %v828
        %870 = vmatpush2.bf16.msra.mxu0 %v827
        %871 = vmatprep.subr.bf16.mxu0 %v826
        %872 = vmatpush2.bf16.msra.mxu0 %v825
        %873 = vmatprep.mubr.bf16.mxu0 %v802
        %874 = vmatmul.mubr.bf16.gmra.mxu0 %v801
        %v875 = vpop.f32.mrf.mxu0
        %v876 = vadd.f32 0.0, %v875
        %v877 = vpop.f32.mrf.mxu0
        %v878 = vadd.f32 0.0, %v877
        %v879 = vpop.f32.mrf.mxu0
        %v880 = vadd.f32 0.0, %v879
        %v881 = vpop.f32.mrf.mxu0
        %v882 = vadd.f32 0.0, %v881
        %883 = vmatprep.mubr.bf16.mxu0 %v804
        %884 = vmatmul.mubr.bf16.gmra.mxu0 %v803
        %v885 = vpop.f32.mrf.mxu0
        %v886 = vadd.f32 0.0, %v885
        %v887 = vpop.f32.mrf.mxu0
        %v888 = vadd.f32 0.0, %v887
        %v889 = vpop.f32.mrf.mxu0
        %v890 = vadd.f32 0.0, %v889
        %v891 = vpop.f32.mrf.mxu0
        %v892 = vadd.f32 0.0, %v891
        %893 = vmatprep.mubr.bf16.mxu0 %v806
        %894 = vmatmul.mubr.bf16.gmra.mxu0 %v805
        %v895 = vpop.f32.mrf.mxu0
        %v896 = vadd.f32 0.0, %v895
        %v897 = vpop.f32.mrf.mxu0
        %v898 = vadd.f32 0.0, %v897
        %v899 = vpop.f32.mrf.mxu0
        %v900 = vadd.f32 0.0, %v899
        %v901 = vpop.f32.mrf.mxu0
        %v902 = vadd.f32 0.0, %v901
        %903 = vmatprep.mubr.bf16.mxu0 %v808
        %904 = vmatmul.mubr.bf16.gmra.mxu0 %v807
        %v905 = vpop.f32.mrf.mxu0
        %v906 = vadd.f32 0.0, %v905
        %v907 = vpop.f32.mrf.mxu0
        %v908 = vadd.f32 0.0, %v907
        %v909 = vpop.f32.mrf.mxu0
        %v910 = vadd.f32 0.0, %v909
        %v911 = vpop.f32.mrf.mxu0
        %v912 = vadd.f32 0.0, %v911
        %913 = vdwg.mxu0
        %v914 = vadd.f32 %v769, %v876
        %v915 = vadd.f32 %v770, %v878
        %v916 = vadd.f32 %v771, %v880
        %v917 = vadd.f32 %v772, %v882
        %v918 = vadd.f32 %v773, %v886
        %v919 = vadd.f32 %v774, %v888
        %v920 = vadd.f32 %v775, %v890
        %v921 = vadd.f32 %v776, %v892
        %v922 = vadd.f32 %v777, %v896
        %v923 = vadd.f32 %v778, %v898
        %v924 = vadd.f32 %v779, %v900
        %v925 = vadd.f32 %v780, %v902
        %v926 = vadd.f32 %v781, %v906
        %v927 = vadd.f32 %v782, %v908
        %v928 = vadd.f32 %v783, %v910
        %v929 = vadd.f32 %v784, %v912
        %930 = vst [vmem:[#allocation2] sm:$0xff] %v914
        %931 = vst [vmem:[#allocation2 + $0x8] sm:$0xff] %v915
        %932 = vst [vmem:[#allocation2 + $0x10] sm:$0xff] %v916
        %933 = vst [vmem:[#allocation2 + $0x18] sm:$0xff] %v917
        %934 = vst [vmem:[#allocation2 + $0x20] sm:$0xff] %v918
        %935 = vst [vmem:[#allocation2 + $0x28] sm:$0xff] %v919
        %936 = vst [vmem:[#allocation2 + $0x30] sm:$0xff] %v920
        %937 = vst [vmem:[#allocation2 + $0x38] sm:$0xff] %v921
        %938 = vst [vmem:[#allocation2 + $0x40] sm:$0xff] %v922
        %939 = vst [vmem:[#allocation2 + $0x48] sm:$0xff] %v923
        %940 = vst [vmem:[#allocation2 + $0x50] sm:$0xff] %v924
        %941 = vst [vmem:[#allocation2 + $0x58] sm:$0xff] %v925
        %942 = vst [vmem:[#allocation2 + $0x60] sm:$0xff] %v926
        %943 = vst [vmem:[#allocation2 + $0x68] sm:$0xff] %v927
        %944 = vst [vmem:[#allocation2 + $0x70] sm:$0xff] %v928
        %945 = vst [vmem:[#allocation2 + $0x78] sm:$0xff] %v929
        // Predicated region
        $region53: #{vcl_forward_with_eps.1} parent=39 // pred_check
          %p946 = pneg %p429
        $region54: #{vcl_forward_with_eps.1} parent=39 // pred_check_branch
          %948 = sbr.rel (%p946) target = $region56
        $region55: #{vcl_forward_with_eps.1} parent=39 // pred_region
          %v949 = vld [vmem:[#allocation2] sm:$0xff]
          %v950 = vld [vmem:[#allocation2 + $0x8] sm:$0xff]
          %v951 = vld [vmem:[#allocation2 + $0x10] sm:$0xff]
          %v952 = vld [vmem:[#allocation2 + $0x18] sm:$0xff]
          %v953 = vld [vmem:[#allocation2 + $0x20] sm:$0xff]
          %v954 = vld [vmem:[#allocation2 + $0x28] sm:$0xff]
          %v955 = vld [vmem:[#allocation2 + $0x30] sm:$0xff]
          %v956 = vld [vmem:[#allocation2 + $0x38] sm:$0xff]
          %v957 = vld [vmem:[#allocation2 + $0x40] sm:$0xff]
          %v958 = vld [vmem:[#allocation2 + $0x48] sm:$0xff]
          %v959 = vld [vmem:[#allocation2 + $0x50] sm:$0xff]
          %v960 = vld [vmem:[#allocation2 + $0x58] sm:$0xff]
          %v961 = vld [vmem:[#allocation2 + $0x60] sm:$0xff]
          %v962 = vld [vmem:[#allocation2 + $0x68] sm:$0xff]
          %v963 = vld [vmem:[#allocation2 + $0x70] sm:$0xff]
          %v964 = vld [vmem:[#allocation2 + $0x78] sm:$0xff]
          %v965 = vld [vmem:[%s426] sm:$0x3]
          %v967 = vlaneseq
          %v968 = vshrl.u32 %v967, 7
          %v969 = vsub.s32 0, %v968
          %v970 = vrot.slane %v965, %v969
          %v971 = vlaneseq
          %v972 = vshrl.u32 %v971, 7
          %v973 = vsub.s32 1, %v972
          %v974 = vrot.slane %v965, %v973
          %v977 = vadd.f32 %v949, %v970
          %v978 = vadd.f32 %v950, %v974
          %v979 = vadd.f32 %v951, %v970
          %v980 = vadd.f32 %v952, %v974
          %v981 = vadd.f32 %v953, %v970
          %v982 = vadd.f32 %v954, %v974
          %v983 = vadd.f32 %v955, %v970
          %v984 = vadd.f32 %v956, %v974
          %v985 = vadd.f32 %v957, %v970
          %v986 = vadd.f32 %v958, %v974
          %v987 = vadd.f32 %v959, %v970
          %v988 = vadd.f32 %v960, %v974
          %v989 = vadd.f32 %v961, %v970
          %v990 = vadd.f32 %v962, %v974
          %v991 = vadd.f32 %v963, %v970
          %v992 = vadd.f32 %v964, %v974
          %993 = vst [vmem:[%s387] sm:$0xff] %v977
          %994 = vst [vmem:[%s387 + $0x8] sm:$0xff] %v978
          %995 = vst [vmem:[%s387 + $0x10] sm:$0xff] %v979
          %996 = vst [vmem:[%s387 + $0x18] sm:$0xff] %v980
          %997 = vst [vmem:[%s387 + $0x20] sm:$0xff] %v981
          %998 = vst [vmem:[%s387 + $0x28] sm:$0xff] %v982
          %999 = vst [vmem:[%s387 + $0x30] sm:$0xff] %v983
          %1000 = vst [vmem:[%s387 + $0x38] sm:$0xff] %v984
          %1001 = vst [vmem:[%s387 + $0x40] sm:$0xff] %v985
          %1002 = vst [vmem:[%s387 + $0x48] sm:$0xff] %v986
          %1003 = vst [vmem:[%s387 + $0x50] sm:$0xff] %v987
          %1004 = vst [vmem:[%s387 + $0x58] sm:$0xff] %v988
          %1005 = vst [vmem:[%s387 + $0x60] sm:$0xff] %v989
          %1006 = vst [vmem:[%s387 + $0x68] sm:$0xff] %v990
          %1007 = vst [vmem:[%s387 + $0x70] sm:$0xff] %v991
          %1008 = vst [vmem:[%s387 + $0x78] sm:$0xff] %v992
        $region56: #{vcl_forward_with_eps.1} parent=39 // pred_fallthru
          _
        %s1009 = sand.u32 %s194, 1
        %s1010 = scalar_lea.sflag [#allocation5], %s1009
        %s1011 = sand.u32 %s194, 1
        %s1012 = smul.addr %s1011, 128
        %s1013 = scalar_lea.vmem [#allocation8], %s1012
        // Predicated region
        $region57: #{vcl_forward_with_eps.1} parent=39 // pred_check
          %p1014 = pneg %p204
        $region58: #{vcl_forward_with_eps.1} parent=39 // pred_check_branch
          %1016 = sbr.rel (%p1014) target = $region60
        $region59: #{vcl_forward_with_eps.1} parent=39 // pred_region
          %s1017 = smul.u32 2, %s28
          %s1019 = ssub.s32 2048, 2048
          %1020 = vsyncadd %s1010, %s1019
          %s1021 = smul.addr %s29, 16
          %s1022 = sadd.s32 %s1017, %s1021
          %s1023 = smul.addr %s1022, 128
          %s1024 = scalar_lea.hbm %s5, %s1023
          %s1025 = sshll.u32 %s1013, 4
          %s1026 = int_to_ptr.vmem [resolvable:$true] %s1025
          %1031 = dma.vmem_to_hbm [thread:$0]  %s1026, 2048, %s1024, %s1010, 256, 256, 16
        $region60: #{vcl_forward_with_eps.1} parent=39 // pred_fallthru
          _
      $region40: #{vcl_forward_with_eps.1} parent=5 // pred_fallthru
        _
      %p1032 = scmp.le.s32.totalorder 2, %s18
      // Predicated region
      $region61: #{vcl_forward_with_eps.1} parent=5 // pred_check
        %p1033 = pneg %p1032
      $region62: #{vcl_forward_with_eps.1} parent=5 // pred_check_branch
        %1035 = sbr.rel (%p1033) target = $region64
      $region63: #{vcl_forward_with_eps.1} parent=5 // pred_region
        %s1036 = ssub.s32 %s18, 2
        // Predicated region
        $region65: #{vcl_forward_with_eps.1} parent=63 // pred_check
          %p1037 = pneg %p210
        $region66: #{vcl_forward_with_eps.1} parent=63 // pred_check_branch
          %1039 = sbr.rel (%p1037) target = $region68
        $region67: #{vcl_forward_with_eps.1} parent=63 // pred_region
          %s1040 = sand.u32 %s195, 1
          %s1041 = scalar_lea.sflag [#allocation5], %s1040
          %s1042 = sand.u32 %s195, 1
          %s1043 = smul.addr %s1042, 128
          %s1044 = scalar_lea.vmem [#allocation8], %s1043
          %1045 = dma.done %s1041, 2048
        $region68: #{vcl_forward_with_eps.1} parent=63 // pred_fallthru
          _
      $region64: #{vcl_forward_with_eps.1} parent=5 // pred_fallthru
        _
    $region6: #{vcl_forward_with_eps.1} parent=1 // loop_footer
      %s22 = sadd.s32 1, %s18
    $region7: #{vcl_forward_with_eps.1} parent=1 // loop_footer_branch
      %17 = sbr.rel target = $region3
    $region8: #{vcl_forward_with_eps.1} parent=1 // loop_exit
      _
    %1046 = vsyncpa [#allocation4], 1
    %s1047 = scalar_lea.sflag [#allocation4], 1
    %1048 = vsyncpa %s1047, 1
    %1049 = vsyncpa [#allocation7], 1
    %1050 = vsyncpa [#allocation5], 1
    %s1051 = scalar_lea.sflag [#allocation5], 1
    %1052 = vsyncpa %s1051, 1

</llo_original>
